<compile_context>
chip_gen: v5e
topology: v5e:2x2
jax: 0.10.0
libtpu: 0.0.40
codegen_flags: <defaults>
</compile_context>

<pallas_src>
import numpy as np
import jax
import jax.numpy as jnp
from jax.experimental import pallas as pl
from jax.experimental.pallas import tpu as pltpu

_LANE = 128          # TPU lane width (last axis)
_SUBLANE = 8         # TPU sublane width (second-to-last axis)
_NEG_BIG = -1e9      # finite "-inf" used to pad the class axis of logits


def _round_up(x, m):
    return ((x + m - 1) // m) * m


def _pad2d(a, b_pad, c_pad, col_pad_value):
    b, c = a.shape
    if c < c_pad:
        a = jnp.pad(a, ((0, 0), (0, c_pad - c)), constant_values=col_pad_value)
    if b < b_pad:
        a = jnp.pad(a, ((0, b_pad - b), (0, 0)))
    return a


def _make_semiloss_kernel(bx, bu, cx, cu, tb, n_tiles, bp):
    """bx/bu/cx/cu are the TRUE (unpadded) sizes; tb rows per tile; bp padded B."""
    inv_bx = np.float32(1.0 / bx)
    inv_bucu = np.float32(1.0 / (bu * cu))
    # If there is no batch padding at all, the row masks are statically 1
    # and we skip the extra VALU work.
    need_mask_x = bp != bx
    need_mask_u = bp != bu

    def kernel(ox_ref, tx_ref, ou_ref, tu_ref, lx_ref, lu_ref, acc_ref):
        i = pl.program_id(0)

        @pl.when(i == 0)
        def _init():
            acc_ref[0] = jnp.float32(0.0)
            acc_ref[1] = jnp.float32(0.0)

        ox = ox_ref[...].astype(jnp.float32)
        tx = tx_ref[...].astype(jnp.float32)
        ou = ou_ref[...].astype(jnp.float32)
        tu = tu_ref[...].astype(jnp.float32)

        # Global row indices of this tile -> masks for padded / foreign rows.
        if need_mask_x or need_mask_u:
            row = i * tb + jax.lax.broadcasted_iota(jnp.int32, (tb, 1), 0)

        # ---- Lx partial: -sum_b sum_c( log_softmax(outputs_x) * targets_x )
        mx = jnp.max(ox, axis=1, keepdims=True)
        sx = ox - mx
        lse = jnp.log(jnp.sum(jnp.exp(sx), axis=1, keepdims=True))
        # sum_c((sx - lse)*tx) == sum_c(sx*tx) - lse*sum_c(tx)   (exact)
        row_ce = (jnp.sum(sx * tx, axis=1, keepdims=True)
                  - lse * jnp.sum(tx, axis=1, keepdims=True))
        if need_mask_x:
            row_ce = row_ce * (row < bx).astype(jnp.float32)
        acc_ref[0] += -jnp.sum(row_ce)

        # ---- Lu partial: sum of (softmax(outputs_u) - targets_u)^2
        mu = jnp.max(ou, axis=1, keepdims=True)
        eu = jnp.exp(ou - mu)
        inv_den = pl.reciprocal(jnp.sum(eu, axis=1, keepdims=True), approx=True)
        diff = eu * inv_den - tu
        row_sq = jnp.sum(diff * diff, axis=1, keepdims=True)
        if need_mask_u:
            row_sq = row_sq * (row < bu).astype(jnp.float32)
        acc_ref[1] += jnp.sum(row_sq)

        @pl.when(i == n_tiles - 1)
        def _finalize():
            lx_ref[0, 0] = acc_ref[0] * inv_bx
            lu_ref[0, 0] = acc_ref[1] * inv_bucu

    return kernel


def semi_loss_losses(outputs_x, targets_x, outputs_u, targets_u,
                     max_tile_rows=None):
    """Runs the Pallas kernel; returns (Lx, Lu) as float32 scalars."""
    assert outputs_x.ndim == 2 and outputs_u.ndim == 2
    bx, cx = outputs_x.shape
    bu, cu = outputs_u.shape
    assert targets_x.shape == (bx, cx)
    assert targets_u.shape == (bu, cu)

    # Lane-dense class axis.
    cpx = _round_up(max(cx, _LANE), _LANE)
    cpu = _round_up(max(cu, _LANE), _LANE)

    # Tile rows: largest tile whose 4 double-buffered input blocks fit a
    # ~16 MiB budget (comfortably under the scoped-VMEM limits on all of
    # v5e / v6e / v7x).
    bytes_per_row = (cpx * (outputs_x.dtype.itemsize + targets_x.dtype.itemsize)
                     + cpu * (outputs_u.dtype.itemsize + targets_u.dtype.itemsize))
    budget = 16 * 1024 * 1024
    tb = budget // max(1, 2 * bytes_per_row)
    tb = max(_SUBLANE, min(1024, (tb // _SUBLANE) * _SUBLANE))
    if max_tile_rows is not None:
        tb = max(_SUBLANE, min(tb, (max_tile_rows // _SUBLANE) * _SUBLANE))

    bp0 = _round_up(max(bx, bu), _SUBLANE)
    tb = min(tb, bp0)
    bp = _round_up(bp0, tb)
    n_tiles = bp // tb

    ox = _pad2d(outputs_x, bp, cpx, _NEG_BIG)
    tx = _pad2d(targets_x, bp, cpx, 0)
    ou = _pad2d(outputs_u, bp, cpu, _NEG_BIG)
    tu = _pad2d(targets_u, bp, cpu, 0)

    kernel = _make_semiloss_kernel(bx, bu, cx, cu, tb, n_tiles, bp)

    lx, lu = pl.pallas_call(
        kernel,
        grid=(n_tiles,),
        out_shape=(jax.ShapeDtypeStruct((1, 1), jnp.float32),
                   jax.ShapeDtypeStruct((1, 1), jnp.float32)),
        in_specs=[
            pl.BlockSpec((tb, cpx), lambda i: (i, 0)),
            pl.BlockSpec((tb, cpx), lambda i: (i, 0)),
            pl.BlockSpec((tb, cpu), lambda i: (i, 0)),
            pl.BlockSpec((tb, cpu), lambda i: (i, 0)),
        ],
        out_specs=(
            pl.BlockSpec((1, 1), lambda i: (0, 0), memory_space=pltpu.SMEM),
            pl.BlockSpec((1, 1), lambda i: (0, 0), memory_space=pltpu.SMEM),
        ),
        scratch_shapes=[pltpu.SMEM((2,), jnp.float32)],
        compiler_params=pltpu.CompilerParams(
            dimension_semantics=("arbitrary",),
            vmem_limit_bytes=48 * 1024 * 1024,
        ),
    )(ox, tx, ou, tu)
    return lx[0, 0], lu[0, 0]


def linear_rampup(lambda_u, current, warm_up, rampup_length=16):
    current = np.clip((current - warm_up) / rampup_length, 0.0, 1.0)
    return lambda_u * float(current)


def semi_loss(outputs_x, targets_x, outputs_u, targets_u,
              lambda_u, epoch, warm_up):
    lx, lu = semi_loss_losses(outputs_x, targets_x, outputs_u, targets_u)
    return lx, lu, linear_rampup(lambda_u, epoch, warm_up)


def _reference(ox, tx, ou, tu):
    lp = jax.nn.log_softmax(ox.astype(jnp.float32), axis=1)
    lx = -jnp.mean(jnp.sum(lp * tx.astype(jnp.float32), axis=1))
    lu = jnp.mean((jax.nn.softmax(ou.astype(jnp.float32), axis=1)
                   - tu.astype(jnp.float32)) ** 2)
    return lx, lu


if __name__ == "__main__":
    key = jax.random.PRNGKey(0)

    # ---- test 1: small, equal batches (matches the typical module usage)
    B, C = 8, 16
    k1, k2, k3, k4, k5, k6, k7, k8 = jax.random.split(key, 8)
    outputs_x = jax.random.normal(k1, (B, C), dtype=jnp.float32)
    outputs_u = jax.random.normal(k2, (B, C), dtype=jnp.float32)
    targets_x = jax.nn.softmax(jax.random.normal(k3, (B, C), jnp.float32), axis=1)
    targets_u = jax.nn.softmax(jax.random.normal(k4, (B, C), jnp.float32), axis=1)

    lambda_u, epoch, warm_up = 25.0, 20, 10
    Lx, Lu, w = semi_loss(outputs_x, targets_x, outputs_u, targets_u,
                          lambda_u, epoch, warm_up)
    jax.block_until_ready((Lx, Lu))

    Lx_ref, Lu_ref = _reference(outputs_x, targets_x, outputs_u, targets_u)
    assert jnp.allclose(Lx, Lx_ref, rtol=1e-4, atol=1e-5), (Lx, Lx_ref)
    assert jnp.allclose(Lu, Lu_ref, rtol=1e-3, atol=1e-4), (Lu, Lu_ref)
    assert abs(w - 25.0 * min(max((epoch - warm_up) / 16, 0.0), 1.0)) < 1e-6

    # ---- test 2: multi-tile grid, non-multiple-of-tile batch, Bx != Bu,
    #              non-multiple-of-128 class count (exercises masks/padding).
    Bx2, Bu2, C2 = 100, 72, 12
    ox2 = jax.random.normal(k5, (Bx2, C2), dtype=jnp.float32)
    ou2 = jax.random.normal(k6, (Bu2, C2), dtype=jnp.float32)
    tx2 = jax.nn.softmax(jax.random.normal(k7, (Bx2, C2), jnp.float32), axis=1)
    tu2 = jax.nn.softmax(jax.random.normal(k8, (Bu2, C2), jnp.float32), axis=1)

    Lx2, Lu2 = semi_loss_losses(ox2, tx2, ou2, tu2, max_tile_rows=64)
    jax.block_until_ready((Lx2, Lu2))
    Lx2_ref, Lu2_ref = _reference(ox2, tx2, ou2, tu2)
    assert jnp.allclose(Lx2, Lx2_ref, rtol=1e-4, atol=1e-5), (Lx2, Lx2_ref)
    assert jnp.allclose(Lu2, Lu2_ref, rtol=1e-3, atol=1e-4), (Lu2, Lu2_ref)

    print("KERNEL_OK")
</pallas_src>

<mosaic_0001>
module attributes {stable_mosaic.version = 11 : i64} {
  func.func @kernel(%arg0: i32, %arg1: memref<8x128xf32, #tpu.memory_space<vmem>>, %arg2: memref<8x128xf32, #tpu.memory_space<vmem>>, %arg3: memref<8x128xf32, #tpu.memory_space<vmem>>, %arg4: memref<8x128xf32, #tpu.memory_space<vmem>>, %arg5: memref<1x1xf32, #tpu.memory_space<smem>>, %arg6: memref<1x1xf32, #tpu.memory_space<smem>>, %arg7: memref<2xf32, #tpu.memory_space<smem>>) attributes {dimension_semantics = [#tpu.dimension_semantics<arbitrary>], iteration_bounds = array<i64: 1>, scalar_prefetch = 0 : i64, scratch_operands = 1 : i64, tpu.core_type = #tpu.core_type<tc>, window_params = [{transform_indices = @transform_0, window_bounds = array<i64: 8, 128>}, {transform_indices = @transform_1, window_bounds = array<i64: 8, 128>}, {transform_indices = @transform_2, window_bounds = array<i64: 8, 128>}, {transform_indices = @transform_3, window_bounds = array<i64: 8, 128>}, {transform_indices = @transform_4, window_bounds = array<i64: 1, 1>}, {transform_indices = @transform_5, window_bounds = array<i64: 1, 1>}]} {
    %c0_i32 = arith.constant 0 : i32
    %0 = arith.cmpi eq, %arg0, %c0_i32 : i32
    %1 = arith.extui %0 : i1 to i32
    %c0_i32_0 = arith.constant 0 : i32
    %2 = arith.cmpi ne, %1, %c0_i32_0 : i32
    scf.if %2 {
      %cst_22 = arith.constant 0.000000e+00 : f32
      %c0_23 = arith.constant 0 : index
      %54 = memref.load %arg7[%c0_23] : memref<2xf32, #tpu.memory_space<smem>>
      memref.store %cst_22, %arg7[%c0_23] : memref<2xf32, #tpu.memory_space<smem>>
      %cst_24 = arith.constant 0.000000e+00 : f32
      %c1_25 = arith.constant 1 : index
      %55 = memref.load %arg7[%c1_25] : memref<2xf32, #tpu.memory_space<smem>>
      memref.store %cst_24, %arg7[%c1_25] : memref<2xf32, #tpu.memory_space<smem>>
    } else {
    }
    %c0 = arith.constant 0 : index
    %c0_1 = arith.constant 0 : index
    %3 = vector.load %arg1[%c0, %c0_1] : memref<8x128xf32, #tpu.memory_space<vmem>>, vector<8x128xf32>
    %c0_2 = arith.constant 0 : index
    %c0_3 = arith.constant 0 : index
    %4 = vector.load %arg2[%c0_2, %c0_3] : memref<8x128xf32, #tpu.memory_space<vmem>>, vector<8x128xf32>
    %c0_4 = arith.constant 0 : index
    %c0_5 = arith.constant 0 : index
    %5 = vector.load %arg3[%c0_4, %c0_5] : memref<8x128xf32, #tpu.memory_space<vmem>>, vector<8x128xf32>
    %c0_6 = arith.constant 0 : index
    %c0_7 = arith.constant 0 : index
    %6 = vector.load %arg4[%c0_6, %c0_7] : memref<8x128xf32, #tpu.memory_space<vmem>>, vector<8x128xf32>
    %cst = arith.constant dense<0xFF800000> : vector<8xf32>
    %7 = vector.multi_reduction <maximumf>, %3, %cst [1] : vector<8x128xf32> to vector<8xf32>
    %8 = vector.shape_cast %7 : vector<8xf32> to vector<8x1xf32>
    %9 = vector.broadcast %8 : vector<8x1xf32> to vector<8x128xf32>
    %10 = arith.subf %3, %9 : vector<8x128xf32>
    %11 = math.exp %10 : vector<8x128xf32>
    %cst_8 = arith.constant dense<0.000000e+00> : vector<8xf32>
    %12 = vector.multi_reduction <add>, %11, %cst_8 [1] : vector<8x128xf32> to vector<8xf32>
    %13 = vector.shape_cast %12 : vector<8xf32> to vector<8x1xf32>
    %14 = math.log %13 : vector<8x1xf32>
    %15 = arith.mulf %10, %4 : vector<8x128xf32>
    %cst_9 = arith.constant dense<0.000000e+00> : vector<8xf32>
    %16 = vector.multi_reduction <add>, %15, %cst_9 [1] : vector<8x128xf32> to vector<8xf32>
    %17 = vector.shape_cast %16 : vector<8xf32> to vector<8x1xf32>
    %cst_10 = arith.constant dense<0.000000e+00> : vector<8xf32>
    %18 = vector.multi_reduction <add>, %4, %cst_10 [1] : vector<8x128xf32> to vector<8xf32>
    %19 = vector.shape_cast %18 : vector<8xf32> to vector<8x1xf32>
    %20 = arith.mulf %14, %19 : vector<8x1xf32>
    %21 = arith.subf %17, %20 : vector<8x1xf32>
    %c0_11 = arith.constant 0 : index
    %22 = memref.load %arg7[%c0_11] : memref<2xf32, #tpu.memory_space<smem>>
    %23 = vector.shape_cast %21 : vector<8x1xf32> to vector<1x8x1xf32>
    %cst_12 = arith.constant dense<0.000000e+00> : vector<1xf32>
    %24 = vector.multi_reduction <add>, %23, %cst_12 [1, 2] : vector<1x8x1xf32> to vector<1xf32>
    %25 = vector.shape_cast %24 : vector<1xf32> to vector<1x1x1xf32>
    %26 = vector.extract %25[0, 0, 0] : f32 from vector<1x1x1xf32>
    %cst_13 = arith.constant 0.000000e+00 : f32
    %27 = arith.subf %cst_13, %26 : f32
    %28 = arith.addf %22, %27 : f32
    %c0_14 = arith.constant 0 : index
    %29 = memref.load %arg7[%c0_14] : memref<2xf32, #tpu.memory_space<smem>>
    memref.store %28, %arg7[%c0_14] : memref<2xf32, #tpu.memory_space<smem>>
    %cst_15 = arith.constant dense<0xFF800000> : vector<8xf32>
    %30 = vector.multi_reduction <maximumf>, %5, %cst_15 [1] : vector<8x128xf32> to vector<8xf32>
    %31 = vector.shape_cast %30 : vector<8xf32> to vector<8x1xf32>
    %32 = vector.broadcast %31 : vector<8x1xf32> to vector<8x128xf32>
    %33 = arith.subf %5, %32 : vector<8x128xf32>
    %34 = math.exp %33 : vector<8x128xf32>
    %cst_16 = arith.constant dense<0.000000e+00> : vector<8xf32>
    %35 = vector.multi_reduction <add>, %34, %cst_16 [1] : vector<8x128xf32> to vector<8xf32>
    %36 = vector.shape_cast %35 : vector<8xf32> to vector<8x1xf32>
    %37 = tpu.reciprocal %36 {approx = true} : vector<8x1xf32> -> vector<8x1xf32>
    %38 = vector.broadcast %37 : vector<8x1xf32> to vector<8x128xf32>
    %39 = arith.mulf %34, %38 : vector<8x128xf32>
    %40 = arith.subf %39, %6 : vector<8x128xf32>
    %41 = arith.mulf %40, %40 : vector<8x128xf32>
    %cst_17 = arith.constant dense<0.000000e+00> : vector<8xf32>
    %42 = vector.multi_reduction <add>, %41, %cst_17 [1] : vector<8x128xf32> to vector<8xf32>
    %43 = vector.shape_cast %42 : vector<8xf32> to vector<8x1xf32>
    %c1 = arith.constant 1 : index
    %44 = memref.load %arg7[%c1] : memref<2xf32, #tpu.memory_space<smem>>
    %45 = vector.shape_cast %43 : vector<8x1xf32> to vector<1x8x1xf32>
    %cst_18 = arith.constant dense<0.000000e+00> : vector<1xf32>
    %46 = vector.multi_reduction <add>, %45, %cst_18 [1, 2] : vector<1x8x1xf32> to vector<1xf32>
    %47 = vector.shape_cast %46 : vector<1xf32> to vector<1x1x1xf32>
    %48 = vector.extract %47[0, 0, 0] : f32 from vector<1x1x1xf32>
    %49 = arith.addf %44, %48 : f32
    %c1_19 = arith.constant 1 : index
    %50 = memref.load %arg7[%c1_19] : memref<2xf32, #tpu.memory_space<smem>>
    memref.store %49, %arg7[%c1_19] : memref<2xf32, #tpu.memory_space<smem>>
    %c0_i32_20 = arith.constant 0 : i32
    %51 = arith.cmpi eq, %arg0, %c0_i32_20 : i32
    %52 = arith.extui %51 : i1 to i32
    %c0_i32_21 = arith.constant 0 : i32
    %53 = arith.cmpi ne, %52, %c0_i32_21 : i32
    scf.if %53 {
      %c0_22 = arith.constant 0 : index
      %54 = memref.load %arg7[%c0_22] : memref<2xf32, #tpu.memory_space<smem>>
      %cst_23 = arith.constant 1.250000e-01 : f32
      %55 = arith.mulf %54, %cst_23 : f32
      %c0_24 = arith.constant 0 : index
      %c0_25 = arith.constant 0 : index
      %56 = memref.load %arg5[%c0_24, %c0_25] : memref<1x1xf32, #tpu.memory_space<smem>>
      memref.store %55, %arg5[%c0_24, %c0_25] : memref<1x1xf32, #tpu.memory_space<smem>>
      %c1_26 = arith.constant 1 : index
      %57 = memref.load %arg7[%c1_26] : memref<2xf32, #tpu.memory_space<smem>>
      %cst_27 = arith.constant 7.812500e-03 : f32
      %58 = arith.mulf %57, %cst_27 : f32
      %c0_28 = arith.constant 0 : index
      %c0_29 = arith.constant 0 : index
      %59 = memref.load %arg6[%c0_28, %c0_29] : memref<1x1xf32, #tpu.memory_space<smem>>
      memref.store %58, %arg6[%c0_28, %c0_29] : memref<1x1xf32, #tpu.memory_space<smem>>
    } else {
    }
    return
  }
  func.func @transform_0(%arg0: i32) -> (i32, i32) {
    %c0_i32 = arith.constant 0 : i32
    %c0_i32_0 = arith.constant 0 : i32
    return %arg0, %c0_i32 : i32, i32
  }
  func.func @transform_1(%arg0: i32) -> (i32, i32) {
    %c0_i32 = arith.constant 0 : i32
    %c0_i32_0 = arith.constant 0 : i32
    return %arg0, %c0_i32 : i32, i32
  }
  func.func @transform_2(%arg0: i32) -> (i32, i32) {
    %c0_i32 = arith.constant 0 : i32
    %c0_i32_0 = arith.constant 0 : i32
    return %arg0, %c0_i32 : i32, i32
  }
  func.func @transform_3(%arg0: i32) -> (i32, i32) {
    %c0_i32 = arith.constant 0 : i32
    %c0_i32_0 = arith.constant 0 : i32
    return %arg0, %c0_i32 : i32, i32
  }
  func.func @transform_4(%arg0: i32) -> (i32, i32) {
    %c0_i32 = arith.constant 0 : i32
    %c0_i32_0 = arith.constant 0 : i32
    %c0_i32_1 = arith.constant 0 : i32
    return %c0_i32, %c0_i32_0 : i32, i32
  }
  func.func @transform_5(%arg0: i32) -> (i32, i32) {
    %c0_i32 = arith.constant 0 : i32
    %c0_i32_0 = arith.constant 0 : i32
    %c0_i32_1 = arith.constant 0 : i32
    return %c0_i32, %c0_i32_0 : i32, i32
  }
}

</mosaic_0001>

<llo_original>
// kernel: tpu_custom_call.1
$region0: #{tpu_custom_call.1}
  #allocation0 [shape = 'u32[]', space=smem, size = 0x4, offset = 0x4, fixed_abs, tag = 'smem constant byte address 0x4 - core index']
  #allocation1 [shape = 'u32[72,128]{1,0:T(1,128)}', space=vmem, size = 0x9000, scoped, tag = 'internal scratch']
  #allocation2 [shape = 'f32[2]{0:T(128)}', space=smem, size = 0x200, scoped, tag = 'scratch operand']
  %s0 = inlined_call_operand.hbm [shape: f32[8,128], index: 0, kind: input, shape index: {}]
  %s1 = inlined_call_operand.hbm [shape: f32[8,128], index: 1, kind: input, shape index: {}]
  %s2 = inlined_call_operand.hbm [shape: f32[8,128], index: 2, kind: input, shape index: {}]
  %s3 = inlined_call_operand.hbm [shape: f32[8,128], index: 3, kind: input, shape index: {}]
  %s4 = inlined_call_operand.hbm [shape: f32[1,1], index: 4, kind: output, shape index: {0}]
  %s5 = inlined_call_operand.hbm [shape: f32[1,1], index: 5, kind: output, shape index: {1}]
  %6 = xla_tuple %s4, %s5
  %s7 = sld [smem:[#allocation0]]
  $region58: #{tpu_custom_call.1} parent=0
    _
  %s9 = ssub.s32 1, %s7
  %s10 = scalar_select 0, %s9, %s7
  $region1: #{tpu_custom_call.1} parent=0
    #allocation3 [shape = 'u8[4096]{0}', space=vmem, size = 0x1000, scoped, tag = 'input window, operand 0, single buffered']
    #allocation4 [shape = 's32[1]{0}', space=sflag, size = 0x4, scoped, tag = 'scoped memory for tpu_custom_call.1']
    #allocation5 [shape = 's32[1]{0}', space=sflag, size = 0x4, scoped, tag = 'scoped memory for tpu_custom_call.1']
    #allocation6 [shape = 'u8[4096]{0}', space=vmem, size = 0x1000, scoped, tag = 'input window, operand 1, single buffered']
    #allocation7 [shape = 's32[1]{0}', space=sflag, size = 0x4, scoped, tag = 'scoped memory for tpu_custom_call.1']
    #allocation8 [shape = 'u8[4096]{0}', space=vmem, size = 0x1000, scoped, tag = 'input window, operand 2, single buffered']
    #allocation9 [shape = 'u8[4096]{0}', space=vmem, size = 0x1000, scoped, tag = 'input window, operand 3, single buffered']
    #allocation10 [shape = 's32[1]{0}', space=sflag, size = 0x4, scoped, tag = 'scoped memory for tpu_custom_call.1']
    #allocation11 [shape = 'u8[512]{0}', space=smem, size = 0x200, scoped, tag = 'output window, operand 0, single buffered']
    #allocation12 [shape = 'u8[512]{0}', space=smem, size = 0x200, scoped, tag = 'output window, operand 1, single buffered']
    #allocation13 [shape = 's32[1]{0}', space=sflag, size = 0x4, scoped, tag = 'scoped memory for tpu_custom_call.1']
    %11 = vsyncpa [#allocation4], 0
    %12 = vsyncpa [#allocation7], 0
    %13 = vsyncpa [#allocation10], 0
    %14 = vsyncpa [#allocation5], 0
    %15 = vsyncpa [#allocation13], 0
    // Predicated region
    $region2: #{tpu_custom_call.1} parent=1 // pred_check
      _
    $region3: #{tpu_custom_call.1} parent=1 // pred_check_branch
      %17 = sbr.rel (0) target = $region5
    $region4: #{tpu_custom_call.1} parent=1 // pred_region
      %19 = vsyncadd [#allocation4], 0
      %s21 = sshll.u32 %s0, 4
      %s22 = int_to_ptr.hbm [resolvable:$true] %s21
      %s23 = sshll.u32 [#allocation3], 4
      %s24 = int_to_ptr.vmem [resolvable:$true] %s23
      %26 = dma.hbm_to_vmem [thread:$0]  %s22, 128, %s24, [#allocation4]
    $region5: #{tpu_custom_call.1} parent=1 // pred_fallthru
      _
    // Predicated region
    $region6: #{tpu_custom_call.1} parent=1 // pred_check
      _
    $region7: #{tpu_custom_call.1} parent=1 // pred_check_branch
      %28 = sbr.rel (0) target = $region9
    $region8: #{tpu_custom_call.1} parent=1 // pred_region
      %30 = vsyncadd [#allocation7], 0
      %s32 = sshll.u32 %s1, 4
      %s33 = int_to_ptr.hbm [resolvable:$true] %s32
      %s34 = sshll.u32 [#allocation6], 4
      %s35 = int_to_ptr.vmem [resolvable:$true] %s34
      %37 = dma.hbm_to_vmem [thread:$0]  %s33, 128, %s35, [#allocation7]
    $region9: #{tpu_custom_call.1} parent=1 // pred_fallthru
      _
    // Predicated region
    $region10: #{tpu_custom_call.1} parent=1 // pred_check
      _
    $region11: #{tpu_custom_call.1} parent=1 // pred_check_branch
      %39 = sbr.rel (0) target = $region13
    $region12: #{tpu_custom_call.1} parent=1 // pred_region
      %41 = vsyncadd [#allocation7], 0
      %s43 = sshll.u32 %s2, 4
      %s44 = int_to_ptr.hbm [resolvable:$true] %s43
      %s45 = sshll.u32 [#allocation8], 4
      %s46 = int_to_ptr.vmem [resolvable:$true] %s45
      %48 = dma.hbm_to_vmem [thread:$0]  %s44, 128, %s46, [#allocation7]
    $region13: #{tpu_custom_call.1} parent=1 // pred_fallthru
      _
    // Predicated region
    $region14: #{tpu_custom_call.1} parent=1 // pred_check
      _
    $region15: #{tpu_custom_call.1} parent=1 // pred_check_branch
      %50 = sbr.rel (0) target = $region17
    $region16: #{tpu_custom_call.1} parent=1 // pred_region
      %52 = vsyncadd [#allocation10], 0
      %s54 = sshll.u32 %s3, 4
      %s55 = int_to_ptr.hbm [resolvable:$true] %s54
      %s56 = sshll.u32 [#allocation9], 4
      %s57 = int_to_ptr.vmem [resolvable:$true] %s56
      %59 = dma.hbm_to_vmem [thread:$0]  %s55, 128, %s57, [#allocation10]
    $region17: #{tpu_custom_call.1} parent=1 // pred_fallthru
      _
    // Predicated region
    $region18: #{tpu_custom_call.1} parent=1 // pred_check
      _
    $region19: #{tpu_custom_call.1} parent=1 // pred_check_branch
      %61 = sbr.rel (0) target = $region21
    $region20: #{tpu_custom_call.1} parent=1 // pred_region
      %63 = dma.done [#allocation4], 128
    $region21: #{tpu_custom_call.1} parent=1 // pred_fallthru
      _
    // Predicated region
    $region22: #{tpu_custom_call.1} parent=1 // pred_check
      _
    $region23: #{tpu_custom_call.1} parent=1 // pred_check_branch
      %65 = sbr.rel (0) target = $region25
    $region24: #{tpu_custom_call.1} parent=1 // pred_region
      %67 = dma.done [#allocation7], 128
    $region25: #{tpu_custom_call.1} parent=1 // pred_fallthru
      _
    // Predicated region
    $region26: #{tpu_custom_call.1} parent=1 // pred_check
      _
    $region27: #{tpu_custom_call.1} parent=1 // pred_check_branch
      %69 = sbr.rel (0) target = $region29
    $region28: #{tpu_custom_call.1} parent=1 // pred_region
      %71 = dma.done [#allocation7], 128
    $region29: #{tpu_custom_call.1} parent=1 // pred_fallthru
      _
    // Predicated region
    $region30: #{tpu_custom_call.1} parent=1 // pred_check
      _
    $region31: #{tpu_custom_call.1} parent=1 // pred_check_branch
      %73 = sbr.rel (0) target = $region33
    $region32: #{tpu_custom_call.1} parent=1 // pred_region
      %75 = dma.done [#allocation10], 128
    $region33: #{tpu_custom_call.1} parent=1 // pred_fallthru
      _
    %p76 = scmp.eq.s32.totalorder 0, 0
    // Predicated region
    $region34: #{tpu_custom_call.1} parent=1 // pred_check
      %p77 = pneg %p76
    $region35: #{tpu_custom_call.1} parent=1 // pred_check_branch
      %79 = sbr.rel (%p77) target = $region37
    $region36: #{tpu_custom_call.1} parent=1 // pred_region
      %s80 = scalar_lea.smem [#allocation2], 0
      %81 = sst [smem:[%s80]] 0.0
      %s82 = scalar_lea.smem [#allocation2], 1
      %83 = sst [smem:[%s82]] 0.0
    $region37: #{tpu_custom_call.1} parent=1 // pred_fallthru
      _
    %v84 = vld [vmem:[#allocation3] sm:$0xff]
    %v85 = vld [vmem:[#allocation6] sm:$0xff]
    %v86 = vld [vmem:[#allocation8] sm:$0xff]
    %v87 = vld [vmem:[#allocation9] sm:$0xff]
    %88 = vmax.xlane.f32.xlu0 %v84
    %v89 = vpop.xlane.xlu0 %88
    %v90 = vsub.f32 %v84, %v89
    %v91 = vmul.f32 %v90, 1.442695
    %v92 = vpow.pop %v91
    %93 = vadd.xlane.f32.xlu0 %v92
    %v94 = vpop.xlane.xlu0 %93
    %v95 = vlog2.pop %v94
    %v96 = vmul.f32 %v95, 0.6931472
    %v97 = vmul.f32 %v90, %v85
    %98 = vadd.xlane.f32.xlu0 %v97
    %v99 = vpop.xlane.xlu0 %98
    %100 = vadd.xlane.f32.xlu0 %v85
    %v101 = vpop.xlane.xlu0 %100
    %v102 = vmul.f32 %v96, %v101
    %v103 = vsub.f32 %v99, %v102
    %s104 = sld [smem:[#allocation2]]
    %vm105 = vcmask 7168
    %v106 = vsel %vm105, %v103, 0.0
    %107 = vadd.xlane.f32.xlu0 %v106
    %v108 = vpop.xlane.xlu0 %107
    %v109 = vrot.slane %v108, 4
    %v110 = vadd.f32 %v108, %v109
    %v111 = vrot.slane %v110, 2
    %v112 = vadd.f32 %v110, %v111
    %v113 = vrot.slane %v112, 1
    %v114 = vadd.f32 %v112, %v113
    %s115 = vtos %v114
    %s116 = ssub.f32 0.0, %s115
    %s117 = sadd.f32 %s104, %s116
    %s118 = scalar_lea.smem [#allocation2], 0
    %119 = sst [smem:[%s118]] %s117
    %120 = vmax.xlane.f32.xlu0 %v86
    %v121 = vpop.xlane.xlu0 %120
    %v122 = vsub.f32 %v86, %v121
    %v123 = vmul.f32 %v122, 1.442695
    %v124 = vpow.pop %v123
    %125 = vadd.xlane.f32.xlu0 %v124
    %v126 = vpop.xlane.xlu0 %125
    %v127 = vrcp.pop %v126
    %v128 = vmul.f32 %v124, %v127
    %v129 = vsub.f32 %v128, %v87
    %v130 = vmul.f32 %v129, %v129
    %131 = vadd.xlane.f32.xlu0 %v130
    %v132 = vpop.xlane.xlu0 %131
    %s133 = sld [smem:[#allocation2 + $0x1]]
    %v134 = vsel %vm105, %v132, 0.0
    %135 = vadd.xlane.f32.xlu0 %v134
    %v136 = vpop.xlane.xlu0 %135
    %v137 = vrot.slane %v136, 4
    %v138 = vadd.f32 %v136, %v137
    %v139 = vrot.slane %v138, 2
    %v140 = vadd.f32 %v138, %v139
    %v141 = vrot.slane %v140, 1
    %v142 = vadd.f32 %v140, %v141
    %s143 = vtos %v142
    %s144 = sadd.f32 %s133, %s143
    %s145 = scalar_lea.smem [#allocation2], 1
    %146 = sst [smem:[%s145]] %s144
    // Predicated region
    $region38: #{tpu_custom_call.1} parent=1 // pred_check
      %p147 = pneg %p76
    $region39: #{tpu_custom_call.1} parent=1 // pred_check_branch
      %149 = sbr.rel (%p147) target = $region41
    $region40: #{tpu_custom_call.1} parent=1 // pred_region
      %s150 = sld [smem:[#allocation2]]
      %s151 = smul.f32 %s150, 0.125
      %s152 = scalar_lea.smem [#allocation11], 0
      %153 = sst [smem:[%s152]] %s151
      %s154 = sld [smem:[#allocation2 + $0x1]]
      %s155 = smul.f32 %s154, 0.0078125
      %s156 = scalar_lea.smem [#allocation12], 0
      %157 = sst [smem:[%s156]] %s155
    $region41: #{tpu_custom_call.1} parent=1 // pred_fallthru
      _
    // Predicated region
    $region42: #{tpu_custom_call.1} parent=1 // pred_check
      _
    $region43: #{tpu_custom_call.1} parent=1 // pred_check_branch
      %159 = sbr.rel (0) target = $region45
    $region44: #{tpu_custom_call.1} parent=1 // pred_region
      %161 = vsyncadd [#allocation5], 0
      %s163 = sshll.u32 %s4, 4
      %s164 = int_to_ptr.hbm [resolvable:$true] %s163
      %166 = dma.smem_to_hbm [#allocation11], 16, %s164, [#allocation5]
    $region45: #{tpu_custom_call.1} parent=1 // pred_fallthru
      _
    // Predicated region
    $region46: #{tpu_custom_call.1} parent=1 // pred_check
      _
    $region47: #{tpu_custom_call.1} parent=1 // pred_check_branch
      %168 = sbr.rel (0) target = $region49
    $region48: #{tpu_custom_call.1} parent=1 // pred_region
      %170 = vsyncadd [#allocation13], 0
      %s172 = sshll.u32 %s5, 4
      %s173 = int_to_ptr.hbm [resolvable:$true] %s172
      %175 = dma.smem_to_hbm [#allocation12], 16, %s173, [#allocation13]
    $region49: #{tpu_custom_call.1} parent=1 // pred_fallthru
      _
    // Predicated region
    $region50: #{tpu_custom_call.1} parent=1 // pred_check
      _
    $region51: #{tpu_custom_call.1} parent=1 // pred_check_branch
      %177 = sbr.rel (0) target = $region53
    $region52: #{tpu_custom_call.1} parent=1 // pred_region
      %179 = dma.done [#allocation5], 16
    $region53: #{tpu_custom_call.1} parent=1 // pred_fallthru
      _
    // Predicated region
    $region54: #{tpu_custom_call.1} parent=1 // pred_check
      _
    $region55: #{tpu_custom_call.1} parent=1 // pred_check_branch
      %181 = sbr.rel (0) target = $region57
    $region56: #{tpu_custom_call.1} parent=1 // pred_region
      %183 = dma.done [#allocation13], 16
    $region57: #{tpu_custom_call.1} parent=1 // pred_fallthru
      _
    %184 = sfence
    %185 = vsyncpa [#allocation4], 1
    %186 = vsyncpa [#allocation7], 1
    %187 = vsyncpa [#allocation10], 1
    %188 = vsyncpa [#allocation5], 1
    %189 = vsyncpa [#allocation13], 1

</llo_original>
